<compile_context>
chip_gen: v5e
topology: v5e:2x2
jax: 0.10.0
libtpu: 0.0.40
codegen_flags: <defaults>
</compile_context>

<pallas_src>
import functools
import math

import jax
import jax.numpy as jnp
from jax.experimental import pallas as pl
from jax.experimental.pallas import tpu as pltpu

_LANE = 128


def _round_up(x: int, m: int) -> int:
    return ((x + m - 1) // m) * m


def _layernorm_kernel(x_ref, alpha_ref, bias_ref, o_ref, *, eps: float, n_features: int):
    x = x_ref[...].astype(jnp.float32)                      # (tile_rows, F)
    inv_n = 1.0 / float(n_features)
    mean = jnp.sum(x, axis=-1, keepdims=True) * inv_n       # (tile_rows, 1)
    centered = x - mean
    inv_nm1 = 1.0 / float(max(n_features - 1, 1))           # unbiased (N-1), guard F == 1
    var = jnp.sum(centered * centered, axis=-1, keepdims=True) * inv_nm1
    d = jnp.sqrt(var) + eps
    # EUP approximate reciprocal + one Newton step -> full f32 precision,
    # keeps the divide off the vector ALU path.
    inv = pl.reciprocal(d, approx=True)
    inv = inv * (2.0 - d * inv)
    # alpha/bias are f32, shape (1, F) -> broadcast over rows.
    o_ref[...] = (alpha_ref[...] * (centered * inv) + bias_ref[...]).astype(o_ref.dtype)


def _pick_vmem_limit_bytes() -> int:
    """Per-generation VMEM cap for the pipelined blocks."""
    try:
        cap = int(pltpu.get_tpu_info().vmem_capacity_bytes)
    except Exception:
        cap = 64 * 1024 * 1024  # conservative: v7x per-TensorCore VMEM
    # ~70% of physical, never above 96 MiB, never below the 32 MiB scoped default.
    return max(32 * 1024 * 1024, min(int(cap * 0.7), 96 * 1024 * 1024))


@functools.partial(jax.jit, static_argnames=("eps", "tile_rows"))
def layer_normalization(x, alpha, bias, *, eps: float = 1e-6, tile_rows: int | None = None):
    """Layer norm over the last axis of x. x: (..., F); alpha, bias: (F,)."""
    orig_shape = x.shape
    F = int(orig_shape[-1])
    rows = int(math.prod(orig_shape[:-1])) if len(orig_shape) > 1 else 1
    x2 = x.reshape(rows, F)
    alpha2 = alpha.astype(jnp.float32).reshape(1, F)
    bias2 = bias.astype(jnp.float32).reshape(1, F)

    itemsize = jnp.dtype(x.dtype).itemsize
    sublane = {4: 8, 2: 16, 1: 32}.get(itemsize, 8)
    F_lanes = _round_up(F, _LANE)  # VMEM footprint per row (lane padding in VMEM only)

    vmem_limit = _pick_vmem_limit_bytes()
    if rows <= sublane:
        # Full-extent row block: always legal, single grid step.
        tile_rows = rows
    else:
        if tile_rows is None:
            # Double-buffered in + out blocks in HBM dtype (4*itemsize) plus
            # ~4 live f32 temporaries in the body (+16 B/elem, conservative).
            budget = int(vmem_limit * 0.75)
            bytes_per_row = F_lanes * (4 * itemsize + 16)
            tile_rows = budget // max(bytes_per_row, 1)
            tile_rows = min(max(tile_rows, sublane), 512)   # 512: roofline plateau
        # Keep >= ~4 grid steps so the v7x megacore (2 TCs) and the pipeline
        # both have work; never drop below one sublane group.
        cap_parallel = _round_up(max(1, -(-rows // 4)), sublane)
        tile_rows = min(int(tile_rows), cap_parallel, 512)
        tile_rows = max(sublane, (tile_rows // sublane) * sublane)

    grid = (pl.cdiv(rows, tile_rows),)   # ragged last block: OOB rows dropped on store
    kernel = functools.partial(_layernorm_kernel, eps=float(eps), n_features=F)

    out = pl.pallas_call(
        kernel,
        out_shape=jax.ShapeDtypeStruct((rows, F), x.dtype),
        grid_spec=pltpu.PrefetchScalarGridSpec(
            num_scalar_prefetch=0,
            grid=grid,
            in_specs=[
                pl.BlockSpec((tile_rows, F), lambda i: (i, 0)),
                pl.BlockSpec((1, F), lambda i: (0, 0)),
                pl.BlockSpec((1, F), lambda i: (0, 0)),
            ],
            out_specs=pl.BlockSpec((tile_rows, F), lambda i: (i, 0)),
        ),
        compiler_params=pltpu.CompilerParams(
            dimension_semantics=("parallel",),   # shards rows across the 2 TCs on v7x
            vmem_limit_bytes=int(vmem_limit),
        ),
    )(x2, alpha2, bias2)

    return out.reshape(orig_shape)


def _reference(x, alpha, bias, eps):
    mean = jnp.mean(x, axis=-1, keepdims=True)
    std = jnp.std(x, axis=-1, keepdims=True, ddof=1)   # unbiased, PyTorch x.std()
    return alpha * (x - mean) / (std + eps) + bias


if __name__ == "__main__":
    key = jax.random.PRNGKey(0)
    eps = 1e-6

    # Primary demo shape (matches the module's transformer-style usage).
    batch, seq, features = 2, 8, 32
    x = jax.random.normal(key, (batch, seq, features), dtype=jnp.float32)
    alpha = jnp.ones((features,), dtype=jnp.float32)   # nn.Parameter(torch.ones(features))
    bias = jnp.zeros((features,), dtype=jnp.float32)   # nn.Parameter(torch.zeros(features))

    out = layer_normalization(x, alpha, bias, eps=eps)
    out = jax.block_until_ready(out)
    ref = _reference(x, alpha, bias, eps)
    assert out.shape == x.shape and out.dtype == x.dtype
    assert jnp.allclose(out, ref, atol=1e-5, rtol=1e-5)

    # Awkward row count (3*5=15 rows) exercises the ragged-last-block path.
    key2 = jax.random.PRNGKey(1)
    x2 = jax.random.normal(key2, (3, 5, features), dtype=jnp.float32)
    out2 = jax.block_until_ready(layer_normalization(x2, alpha, bias, eps=eps))
    ref2 = _reference(x2, alpha, bias, eps)
    assert out2.shape == x2.shape
    assert jnp.allclose(out2, ref2, atol=1e-5, rtol=1e-5)

    print("KERNEL_OK")
</pallas_src>

<mosaic_0001>
module attributes {stable_mosaic.version = 11 : i64} {
  func.func @_layernorm_kernel(%arg0: i32, %arg1: memref<8x32xf32, #tpu.memory_space<vmem>>, %arg2: memref<1x32xf32, #tpu.memory_space<vmem>>, %arg3: memref<1x32xf32, #tpu.memory_space<vmem>>, %arg4: memref<8x32xf32, #tpu.memory_space<vmem>>) attributes {dimension_semantics = [#tpu.dimension_semantics<parallel>], iteration_bounds = array<i64: 2>, scalar_prefetch = 0 : i64, scratch_operands = 0 : i64, tpu.core_type = #tpu.core_type<tc>, window_params = [{transform_indices = @transform_0, window_bounds = array<i64: 8, 32>}, {pipeline_mode = #tpu.pipeline_mode<synchronous>, transform_indices = @transform_1, window_bounds = array<i64: 1, 32>}, {pipeline_mode = #tpu.pipeline_mode<synchronous>, transform_indices = @transform_2, window_bounds = array<i64: 1, 32>}, {transform_indices = @transform_3, window_bounds = array<i64: 8, 32>}]} {
    %c0 = arith.constant 0 : index
    %c0_0 = arith.constant 0 : index
    %0 = vector.load %arg1[%c0, %c0_0] : memref<8x32xf32, #tpu.memory_space<vmem>>, vector<8x32xf32>
    %cst = arith.constant dense<0.000000e+00> : vector<8xf32>
    %1 = vector.multi_reduction <add>, %0, %cst [1] : vector<8x32xf32> to vector<8xf32>
    %2 = vector.shape_cast %1 : vector<8xf32> to vector<8x1xf32>
    %cst_1 = arith.constant 3.125000e-02 : f32
    %3 = vector.broadcast %cst_1 : f32 to vector<8x1xf32>
    %4 = arith.mulf %2, %3 : vector<8x1xf32>
    %5 = vector.broadcast %4 : vector<8x1xf32> to vector<8x32xf32>
    %6 = arith.subf %0, %5 : vector<8x32xf32>
    %7 = arith.mulf %6, %6 : vector<8x32xf32>
    %cst_2 = arith.constant dense<0.000000e+00> : vector<8xf32>
    %8 = vector.multi_reduction <add>, %7, %cst_2 [1] : vector<8x32xf32> to vector<8xf32>
    %9 = vector.shape_cast %8 : vector<8xf32> to vector<8x1xf32>
    %cst_3 = arith.constant 0.0322580636 : f32
    %10 = vector.broadcast %cst_3 : f32 to vector<8x1xf32>
    %11 = arith.mulf %9, %10 : vector<8x1xf32>
    %12 = math.sqrt %11 : vector<8x1xf32>
    %cst_4 = arith.constant 9.99999997E-7 : f32
    %13 = vector.broadcast %cst_4 : f32 to vector<8x1xf32>
    %14 = arith.addf %12, %13 : vector<8x1xf32>
    %15 = tpu.reciprocal %14 {approx = true} : vector<8x1xf32> -> vector<8x1xf32>
    %16 = arith.mulf %14, %15 : vector<8x1xf32>
    %cst_5 = arith.constant 2.000000e+00 : f32
    %17 = vector.broadcast %cst_5 : f32 to vector<8x1xf32>
    %18 = arith.subf %17, %16 : vector<8x1xf32>
    %19 = arith.mulf %15, %18 : vector<8x1xf32>
    %c0_6 = arith.constant 0 : index
    %c0_7 = arith.constant 0 : index
    %20 = vector.load %arg2[%c0_6, %c0_7] : memref<1x32xf32, #tpu.memory_space<vmem>>, vector<1x32xf32>
    %21 = vector.broadcast %19 : vector<8x1xf32> to vector<8x32xf32>
    %22 = arith.mulf %6, %21 : vector<8x32xf32>
    %23 = vector.broadcast %20 : vector<1x32xf32> to vector<8x32xf32>
    %24 = arith.mulf %23, %22 : vector<8x32xf32>
    %c0_8 = arith.constant 0 : index
    %c0_9 = arith.constant 0 : index
    %25 = vector.load %arg3[%c0_8, %c0_9] : memref<1x32xf32, #tpu.memory_space<vmem>>, vector<1x32xf32>
    %26 = vector.broadcast %25 : vector<1x32xf32> to vector<8x32xf32>
    %27 = arith.addf %24, %26 : vector<8x32xf32>
    %c0_10 = arith.constant 0 : index
    %c0_11 = arith.constant 0 : index
    %28 = vector.load %arg4[%c0_10, %c0_11] : memref<8x32xf32, #tpu.memory_space<vmem>>, vector<8x32xf32>
    tpu.vector_store %arg4[%c0_10, %c0_11], %27 {strides = array<i32>} : memref<8x32xf32, #tpu.memory_space<vmem>>, vector<8x32xf32>,
    return
  }
  func.func @transform_0(%arg0: i32) -> (i32, i32) {
    %c0_i32 = arith.constant 0 : i32
    %c0_i32_0 = arith.constant 0 : i32
    return %arg0, %c0_i32 : i32, i32
  }
  func.func @transform_1(%arg0: i32) -> (i32, i32) {
    %c0_i32 = arith.constant 0 : i32
    %c0_i32_0 = arith.constant 0 : i32
    %c0_i32_1 = arith.constant 0 : i32
    return %c0_i32, %c0_i32_0 : i32, i32
  }
  func.func @transform_2(%arg0: i32) -> (i32, i32) {
    %c0_i32 = arith.constant 0 : i32
    %c0_i32_0 = arith.constant 0 : i32
    %c0_i32_1 = arith.constant 0 : i32
    return %c0_i32, %c0_i32_0 : i32, i32
  }
  func.func @transform_3(%arg0: i32) -> (i32, i32) {
    %c0_i32 = arith.constant 0 : i32
    %c0_i32_0 = arith.constant 0 : i32
    return %arg0, %c0_i32 : i32, i32
  }
}

</mosaic_0001>

<llo_original>
// kernel: layer_normalization.1
$region0: #{layer_normalization.1}
  #allocation0 [shape = 'u32[]', space=smem, size = 0x4, offset = 0x4, fixed_abs, tag = 'smem constant byte address 0x4 - core index']
  #allocation1 [shape = 'u32[72,128]{1,0:T(1,128)}', space=vmem, size = 0x9000, scoped, tag = 'internal scratch']
  %s0 = inlined_call_operand.hbm [shape: f32[16,32], index: 0, kind: input, shape index: {}]
  %s1 = inlined_call_operand.vmem [shape: f32[1,32], index: 1, kind: input, shape index: {}]
  %s2 = inlined_call_operand.vmem [shape: f32[1,32], index: 2, kind: input, shape index: {}]
  %s3 = inlined_call_operand.hbm [shape: f32[16,32], index: 3, kind: output, shape index: {}]
  %s4 = sld [smem:[#allocation0]]
  $region49: #{layer_normalization.1} parent=0
    _
  %s6 = ssub.s32 1, %s4
  %s7 = scalar_select 0, %s6, %s4
  $region1: #{layer_normalization.1} parent=0
    #allocation2 [shape = 'u8[8192]{0}', space=vmem, size = 0x2000, scoped, tag = 'input window, operand 0']
    #allocation3 [shape = 's32[2]{0}', space=sflag, size = 0x8, scoped, tag = 'scoped memory for layer_normalization.1']
    #allocation4 [shape = 's32[2]{0}', space=sflag, size = 0x8, scoped, tag = 'scoped memory for layer_normalization.1']
    #allocation5 [shape = 'u8[8192]{0}', space=vmem, size = 0x2000, scoped, tag = 'output window, operand 0']
    %8 = vsyncpa [#allocation3], 0
    %s9 = scalar_lea.sflag [#allocation3], 1
    %10 = vsyncpa %s9, 0
    %11 = vsyncpa [#allocation4], 0
    %s12 = scalar_lea.sflag [#allocation4], 1
    %13 = vsyncpa %s12, 0
    loop: start=0, step=1, limit=4
    $region2: #{layer_normalization.1} parent=1 // loop_pre_header
      _
    $region3: #{layer_normalization.1} parent=1 // loop_header
      %s15 = sphi 0, %s19
      %p16 = scmp.ge.s32.totalorder %s15, 4
      %s25 = sphi 0, %s27
      %s28 = sphi 0, %s25
      %s29 = sphi 0, %s28
      %s45 = sphi 0, %s29
      %s49 = sphi 0, %s49
      %s51 = sphi 0, %s49
      %s52 = sphi 0, %s51
      %s66 = sphi 0, %s52
      %s70 = sphi 0, %s70
      %s72 = sphi 0, %s70
      %s73 = sphi 0, %s72
      %s87 = sphi 0, %s73
      %s93 = sphi 0, %s95
      %s96 = sphi 0, %s93
      %s97 = sphi 0, %s96
      %s113 = sphi 0, %s97
    $region4: #{layer_normalization.1} parent=1 // loop_header_branch
      %18 = sbr.rel (%p16) target = $region8
    $region5: #{layer_normalization.1} parent=1 // loop_body
      %s20 = ssub.s32 %s15, 1
      %s21 = ssub.s32 %s15, 2
      %s22 = sadd.s32 %s15, 1
      %s23 = ssub.s32 %s15, %s22
      %p24 = scmp.eq.s32.totalorder %s23, 0
      %s26 = sadd.s32 %s25, 1
      %s27 = scalar_select %p24, %s25, %s26
      %p30 = pneg %p24
      %p31 = scmp.eq.s32.totalorder %s15, 1
      %p32 = por %p30, %p31
      %p33 = scmp.ne.s32.totalorder %s25, %s28
      %p34 = scmp.eq.s32.totalorder %s15, 0
      %p35 = por %p33, %p34
      %p36 = scmp.ne.s32.totalorder %s25, %s28
      %p37 = scmp.eq.s32.totalorder %s20, 1
      %p38 = por %p36, %p37
      %p39 = scmp.ne.s32.totalorder %s28, %s29
      %p40 = scmp.eq.s32.totalorder %s20, 0
      %p41 = por %p39, %p40
      %p42 = scmp.ne.s32.totalorder %s28, %s29
      %p43 = scmp.eq.s32.totalorder %s21, 1
      %p44 = por %p42, %p43
      %p46 = scmp.ne.s32.totalorder %s29, %s45
      %p47 = scmp.eq.s32.totalorder %s21, 0
      %p48 = por %p46, %p47
      %s50 = sadd.s32 %s49, 1
      %p53 = scmp.eq.s32.totalorder %s15, 1
      %p54 = scmp.ne.s32.totalorder %s49, %s51
      %p55 = scmp.eq.s32.totalorder %s15, 0
      %p56 = por %p54, %p55
      %p57 = scmp.ne.s32.totalorder %s49, %s51
      %p58 = scmp.eq.s32.totalorder %s20, 1
      %p59 = por %p57, %p58
      %p60 = scmp.ne.s32.totalorder %s51, %s52
      %p61 = scmp.eq.s32.totalorder %s20, 0
      %p62 = por %p60, %p61
      %p63 = scmp.ne.s32.totalorder %s51, %s52
      %p64 = scmp.eq.s32.totalorder %s21, 1
      %p65 = por %p63, %p64
      %p67 = scmp.ne.s32.totalorder %s52, %s66
      %p68 = scmp.eq.s32.totalorder %s21, 0
      %p69 = por %p67, %p68
      %s71 = sadd.s32 %s70, 1
      %p74 = scmp.eq.s32.totalorder %s15, 1
      %p75 = scmp.ne.s32.totalorder %s70, %s72
      %p76 = scmp.eq.s32.totalorder %s15, 0
      %p77 = por %p75, %p76
      %p78 = scmp.ne.s32.totalorder %s70, %s72
      %p79 = scmp.eq.s32.totalorder %s20, 1
      %p80 = por %p78, %p79
      %p81 = scmp.ne.s32.totalorder %s72, %s73
      %p82 = scmp.eq.s32.totalorder %s20, 0
      %p83 = por %p81, %p82
      %p84 = scmp.ne.s32.totalorder %s72, %s73
      %p85 = scmp.eq.s32.totalorder %s21, 1
      %p86 = por %p84, %p85
      %p88 = scmp.ne.s32.totalorder %s73, %s87
      %p89 = scmp.eq.s32.totalorder %s21, 0
      %p90 = por %p88, %p89
      %s91 = ssub.s32 %s15, %s22
      %p92 = scmp.eq.s32.totalorder %s91, 0
      %s94 = sadd.s32 %s93, 1
      %s95 = scalar_select %p92, %s93, %s94
      %p98 = pneg %p92
      %p99 = scmp.eq.s32.totalorder %s15, 1
      %p100 = por %p98, %p99
      %p101 = scmp.ne.s32.totalorder %s93, %s96
      %p102 = scmp.eq.s32.totalorder %s15, 0
      %p103 = por %p101, %p102
      %p104 = scmp.ne.s32.totalorder %s93, %s96
      %p105 = scmp.eq.s32.totalorder %s20, 1
      %p106 = por %p104, %p105
      %p107 = scmp.ne.s32.totalorder %s96, %s97
      %p108 = scmp.eq.s32.totalorder %s20, 0
      %p109 = por %p107, %p108
      %p110 = scmp.ne.s32.totalorder %s96, %s97
      %p111 = scmp.eq.s32.totalorder %s21, 1
      %p112 = por %p110, %p111
      %p114 = scmp.ne.s32.totalorder %s97, %s113
      %p115 = scmp.eq.s32.totalorder %s21, 0
      %p116 = por %p114, %p115
      %p117 = scmp.le.s32.totalorder 1, %s15
      %p118 = scmp.lt.s32.totalorder %s15, 3
      %p119 = pnand %p117, %p118
      %p120 = pneg %p119
      // Predicated region
      $region9: #{layer_normalization.1} parent=5 // pred_check
        _
      $region10: #{layer_normalization.1} parent=5 // pred_check_branch
        %122 = sbr.rel (%p119) target = $region12
      $region11: #{layer_normalization.1} parent=5 // pred_region
        %s123 = ssub.s32 %s15, 1
        // Predicated region
        $region13: #{layer_normalization.1} parent=11 // pred_check
          %p124 = pneg %p62
        $region14: #{layer_normalization.1} parent=11 // pred_check_branch
          %126 = sbr.rel (%p124) target = $region16
        $region15: #{layer_normalization.1} parent=11 // pred_region
          _
        $region16: #{layer_normalization.1} parent=11 // pred_fallthru
          _
        // Predicated region
        $region17: #{layer_normalization.1} parent=11 // pred_check
          %p127 = pneg %p83
        $region18: #{layer_normalization.1} parent=11 // pred_check_branch
          %129 = sbr.rel (%p127) target = $region20
        $region19: #{layer_normalization.1} parent=11 // pred_region
          _
        $region20: #{layer_normalization.1} parent=11 // pred_fallthru
          _
      $region12: #{layer_normalization.1} parent=5 // pred_fallthru
        _
      %p130 = scmp.lt.s32.totalorder %s15, 2
      // Predicated region
      $region21: #{layer_normalization.1} parent=5 // pred_check
        %p131 = pneg %p130
      $region22: #{layer_normalization.1} parent=5 // pred_check_branch
        %133 = sbr.rel (%p131) target = $region24
      $region23: #{layer_normalization.1} parent=5 // pred_region
        // Predicated region
        $region25: #{layer_normalization.1} parent=23 // pred_check
          %p134 = pneg %p35
        $region26: #{layer_normalization.1} parent=23 // pred_check_branch
          %136 = sbr.rel (%p134) target = $region28
        $region27: #{layer_normalization.1} parent=23 // pred_region
          %s137 = sand.u32 %s25, 1
          %s138 = scalar_lea.sflag [#allocation3], %s137
          %s139 = sand.u32 %s25, 1
          %s140 = smul.addr %s139, 8
          %s141 = scalar_lea.vmem [#allocation2], %s140
          %143 = vsyncadd %s138, 0
          %s144 = smul.addr %s15, 8
          %s145 = scalar_lea.hbm %s0, %s144
          %s147 = sshll.u32 %s145, 4
          %s148 = int_to_ptr.hbm [resolvable:$true] %s147
          %s149 = sshll.u32 %s141, 4
          %s150 = int_to_ptr.vmem [resolvable:$true] %s149
          %152 = dma.hbm_to_vmem [thread:$0]  %s148, 128, %s150, %s138
        $region28: #{layer_normalization.1} parent=23 // pred_fallthru
          _
      $region24: #{layer_normalization.1} parent=5 // pred_fallthru
        _
      %p153 = scmp.le.s32.totalorder 1, %s15
      %p154 = scmp.lt.s32.totalorder %s15, 3
      %p155 = pnand %p153, %p154
      %p156 = pneg %p155
      // Predicated region
      $region29: #{layer_normalization.1} parent=5 // pred_check
        _
      $region30: #{layer_normalization.1} parent=5 // pred_check_branch
        %158 = sbr.rel (%p155) target = $region32
      $region31: #{layer_normalization.1} parent=5 // pred_region
        %s159 = ssub.s32 %s15, 1
        %s160 = sand.u32 %s28, 1
        %s161 = scalar_lea.sflag [#allocation3], %s160
        %s162 = sand.u32 %s28, 1
        %s163 = smul.addr %s162, 8
        %s164 = scalar_lea.vmem [#allocation2], %s163
        // Predicated region
        $region33: #{layer_normalization.1} parent=31 // pred_check
          %p165 = pneg %p41
        $region34: #{layer_normalization.1} parent=31 // pred_check_branch
          %167 = sbr.rel (%p165) target = $region36
        $region35: #{layer_normalization.1} parent=31 // pred_region
          %169 = dma.done %s161, 128
        $region36: #{layer_normalization.1} parent=31 // pred_fallthru
          _
        %s170 = sand.u32 %s28, 1
        %s171 = scalar_lea.sflag [#allocation3], %s170
        %s172 = sand.u32 %s28, 1
        %s173 = smul.addr %s172, 8
        %s174 = scalar_lea.vmem [#allocation2], %s173
        %p175 = pneg %p41
        %p176 = pneg %p38
        %p177 = pneg %p62
        %p178 = pneg %p59
        %p179 = pneg %p83
        %p180 = pneg %p80
        %p181 = pneg %p109
        %p182 = pneg %p106
        %s183 = sand.u32 %s96, 1
        %s184 = scalar_lea.sflag [#allocation4], %s183
        %s185 = sand.u32 %s96, 1
        %s186 = smul.addr %s185, 8
        %s187 = scalar_lea.vmem [#allocation5], %s186
        %v188 = vld [vmem:[%s164] sm:$0xff]
        %vm189 = vcmask 261120
        %v190 = vsel %vm189, %v188, 0.0
        %191 = vadd.xlane.f32.xlu0 %v190
        %v192 = vpop.xlane.xlu0 %191
        %v193 = vmul.f32 %v192, 0.03125
        %v194 = vsub.f32 %v188, %v193
        %v195 = vmul.f32 %v194, %v194
        %v196 = vsel %vm189, %v195, 0.0
        %197 = vadd.xlane.f32.xlu0 %v196
        %v198 = vpop.xlane.xlu0 %197
        %v199 = vmul.f32 %v198, 0.032258064
        %v200 = vrsqrt.pop %v199
        %v201 = vmul.f32 %v200, %v199
        %v202 = vmul.f32 %v201, %v200
        %v203 = vmul.f32 0.5, %v202
        %v204 = vsub.f32 1.5, %v203
        %v205 = vmul.f32 %v200, %v204
        %v206 = vmul.f32 %v199, %v205
        %vm207 = vcmp.eq.f32.partialorder %v199, inf
        %v208 = vsel %vm207, %v199, %v206
        %vm209 = vcmp.eq.f32.partialorder %v199, 0.0
        %v210 = vand.u32 %v199, 2147483648
        %v211 = vsel %vm209, %v210, %v208
        %v212 = vadd.f32 %v211, 1e-06
        %v213 = vrcp.pop %v212
        %v214 = vmul.f32 %v212, %v213
        %v215 = vsub.f32 2.0, %v214
        %v216 = vmul.f32 %v213, %v215
        %v217 = vld [vmem:[%s1] sm:$0x1]
        %v218 = vmul.f32 %v194, %v216
        %v220 = vperm.slane %v217, 0
        %v222 = vmul.f32 %v220, %v218
        %v223 = vld [vmem:[%s2] sm:$0x1]
        %v225 = vperm.slane %v223, 0
        %v227 = vadd.f32 %v222, %v225
        %228 = vst.msk [vmem:[%s187] sm:$0xff] %vm189, %v227
        %s229 = sand.u32 %s96, 1
        %s230 = scalar_lea.sflag [#allocation4], %s229
        %s231 = sand.u32 %s96, 1
        %s232 = smul.addr %s231, 8
        %s233 = scalar_lea.vmem [#allocation5], %s232
        // Predicated region
        $region37: #{layer_normalization.1} parent=31 // pred_check
          %p234 = pneg %p106
        $region38: #{layer_normalization.1} parent=31 // pred_check_branch
          %236 = sbr.rel (%p234) target = $region40
        $region39: #{layer_normalization.1} parent=31 // pred_region
          %238 = vsyncadd %s230, 0
          %s239 = smul.addr %s20, 8
          %s240 = scalar_lea.hbm %s3, %s239
          %s242 = sshll.u32 %s233, 4
          %s243 = int_to_ptr.vmem [resolvable:$true] %s242
          %s244 = sshll.u32 %s240, 4
          %s245 = int_to_ptr.hbm [resolvable:$true] %s244
          %247 = dma.vmem_to_hbm [thread:$0]  %s243, 128, %s245, %s230
        $region40: #{layer_normalization.1} parent=31 // pred_fallthru
          _
      $region32: #{layer_normalization.1} parent=5 // pred_fallthru
        _
      %p248 = scmp.le.s32.totalorder 2, %s15
      // Predicated region
      $region41: #{layer_normalization.1} parent=5 // pred_check
        %p249 = pneg %p248
      $region42: #{layer_normalization.1} parent=5 // pred_check_branch
        %251 = sbr.rel (%p249) target = $region44
      $region43: #{layer_normalization.1} parent=5 // pred_region
        %s252 = ssub.s32 %s15, 2
        // Predicated region
        $region45: #{layer_normalization.1} parent=43 // pred_check
          %p253 = pneg %p112
        $region46: #{layer_normalization.1} parent=43 // pred_check_branch
          %255 = sbr.rel (%p253) target = $region48
        $region47: #{layer_normalization.1} parent=43 // pred_region
          %s256 = sand.u32 %s97, 1
          %s257 = scalar_lea.sflag [#allocation4], %s256
          %s258 = sand.u32 %s97, 1
          %s259 = smul.addr %s258, 8
          %s260 = scalar_lea.vmem [#allocation5], %s259
          %262 = dma.done %s257, 128
        $region48: #{layer_normalization.1} parent=43 // pred_fallthru
          _
      $region44: #{layer_normalization.1} parent=5 // pred_fallthru
        _
    $region6: #{layer_normalization.1} parent=1 // loop_footer
      %s19 = sadd.s32 1, %s15
    $region7: #{layer_normalization.1} parent=1 // loop_footer_branch
      %14 = sbr.rel target = $region3
    $region8: #{layer_normalization.1} parent=1 // loop_exit
      _
    %263 = vsyncpa [#allocation3], 1
    %s264 = scalar_lea.sflag [#allocation3], 1
    %265 = vsyncpa %s264, 1
    %266 = vsyncpa [#allocation4], 1
    %s267 = scalar_lea.sflag [#allocation4], 1
    %268 = vsyncpa %s267, 1

</llo_original>
